<compile_context>
chip_gen: v5e
topology: v5e:2x2
jax: 0.10.0
libtpu: 0.0.40
codegen_flags: <defaults>
</compile_context>

<pallas_src>
import jax
import jax.numpy as jnp
from jax.experimental import pallas as pl
from jax.experimental.pallas import tpu as pltpu

EPS = 1e-5
LANE = 128


def _round_up(n: int, m: int) -> int:
    return ((n + m - 1) // m) * m


def _make_qnetwork_kernel(n_hidden: int):
    """Kernel closure for a fixed number of hidden layers (unrolled at trace time)."""

    def kernel(*args):
        # args = [x_ref, gb_ref, w_0..w_{n_hidden-1}, w_out_ref, b_out_ref, out_ref]
        x_ref = args[0]
        gb_ref = args[1]
        w_refs = args[2:2 + n_hidden]
        w_out_ref = args[2 + n_hidden]
        b_out_ref = args[3 + n_hidden]
        out_ref = args[-1]

        gb = gb_ref[...]                     # (2*n_hidden, H_pad_max) gamma/beta rows
        h = x_ref[...].astype(jnp.float32)

        for l in range(n_hidden):
            # Linear WITHOUT bias (bias cancels exactly under batch-stat BatchNorm).
            z = jnp.dot(h, w_refs[l][...], preferred_element_type=jnp.float32)

            # One-pass batch statistics (biased variance, PyTorch BN training mode).
            mu = jnp.mean(z, axis=0, keepdims=True)          # (1, H)
            ms = jnp.mean(z * z, axis=0, keepdims=True)      # (1, H)
            var = jnp.maximum(ms - mu * mu, 0.0)

            gamma = gb[2 * l:2 * l + 1, :z.shape[1]]          # (1, H)
            beta = gb[2 * l + 1:2 * l + 2, :z.shape[1]]       # (1, H)

            # Folded BN + ReLU: 2 elementwise passes over the (batch, H) tile.
            scale = gamma * jax.lax.rsqrt(var + EPS)          # (1, H), rsqrt -> EUP
            shift = beta - mu * scale
            h = jnp.maximum(z * scale + shift, 0.0)

        # Final un-normalized layer keeps its bias.
        y = jnp.dot(h, w_out_ref[...], preferred_element_type=jnp.float32)
        y = y + b_out_ref[...]
        out_ref[...] = y.astype(out_ref.dtype)

    return kernel


def pack_params(hidden_params, out_params, state_size, action_size):
    """One-time packing: zero-pad out-feature dims to multiples of 128 (lane-dense),
    drop hidden biases (they cancel under BN), stack gamma/beta into one array."""
    n_hidden = len(hidden_params)
    padded_widths = [_round_up(w.shape[1], LANE) for (w, _, _, _) in hidden_params]
    a_pad = _round_up(action_size, LANE)
    h_max = max(padded_widths) if n_hidden else LANE

    ws = []
    gb_rows = []
    in_dim = state_size  # input x stays unpadded; only out-feature dims are padded
    for li, (w, _b, g, be) in enumerate(hidden_params):
        out_pad = padded_widths[li]
        w_p = jnp.zeros((in_dim, out_pad), jnp.float32).at[: w.shape[0], : w.shape[1]].set(w)
        ws.append(w_p)
        gb_rows.append(jnp.zeros((h_max,), jnp.float32).at[: g.shape[0]].set(g))
        gb_rows.append(jnp.zeros((h_max,), jnp.float32).at[: be.shape[0]].set(be))
        in_dim = out_pad

    gb = jnp.stack(gb_rows, axis=0) if n_hidden else jnp.zeros((2, h_max), jnp.float32)

    w_out, b_out = out_params
    w_out_p = jnp.zeros((in_dim, a_pad), jnp.float32).at[: w_out.shape[0], : w_out.shape[1]].set(w_out)
    b_out_p = jnp.zeros((1, a_pad), jnp.float32).at[0, : b_out.shape[0]].set(b_out)

    return dict(ws=ws, gb=gb, w_out=w_out_p, b_out=b_out_p,
                n_hidden=n_hidden, action_size=action_size, a_pad=a_pad)


def qnetwork_forward(x, packed):
    """x: (batch, state_size) f32. Returns (batch, action_size) f32."""
    n_hidden = packed["n_hidden"]
    batch = x.shape[0]
    a_pad = packed["a_pad"]

    flat_inputs = [x, packed["gb"], *packed["ws"], packed["w_out"], packed["b_out"]]
    vmem = pl.BlockSpec(memory_space=pltpu.MemorySpace.VMEM)

    out_padded = pl.pallas_call(
        _make_qnetwork_kernel(n_hidden),
        out_shape=jax.ShapeDtypeStruct((batch, a_pad), jnp.float32),
        in_specs=[vmem] * len(flat_inputs),
        out_specs=vmem,
        compiler_params=pltpu.CompilerParams(vmem_limit_bytes=32 * 1024 * 1024),
    )(*flat_inputs)
    return out_padded[:, : packed["action_size"]]


def init_params(key, state_size, hidden_layers, action_size):
    """Deterministic PyTorch-style init: U(-1/sqrt(fan_in), 1/sqrt(fan_in))."""
    hidden_params = []
    in_size = state_size
    for h in hidden_layers:
        key, k_w, k_b = jax.random.split(key, 3)
        bound = 1.0 / jnp.sqrt(jnp.float32(in_size))
        w = jax.random.uniform(k_w, (in_size, h), jnp.float32, -bound, bound)
        b = jax.random.uniform(k_b, (h,), jnp.float32, -bound, bound)
        gamma = jnp.ones((h,), jnp.float32)   # BatchNorm1d weight
        beta = jnp.zeros((h,), jnp.float32)   # BatchNorm1d bias
        hidden_params.append((w, b, gamma, beta))
        in_size = h
    key, k_w, k_b = jax.random.split(key, 3)
    bound = 1.0 / jnp.sqrt(jnp.float32(in_size))
    w_out = jax.random.uniform(k_w, (in_size, action_size), jnp.float32, -bound, bound)
    b_out = jax.random.uniform(k_b, (action_size,), jnp.float32, -bound, bound)
    return hidden_params, (w_out, b_out)


def reference_forward(x, hidden_params, out_params):
    """Pure-JAX reference with the full original math (hidden bias INCLUDED,
    two-pass variance) — exactly the PyTorch module in training mode."""
    h = x
    for (w, b, g, be) in hidden_params:
        z = h @ w + b
        mu = jnp.mean(z, axis=0, keepdims=True)
        var = jnp.mean((z - mu) ** 2, axis=0, keepdims=True)
        z = (z - mu) / jnp.sqrt(var + EPS) * g + be
        h = jnp.maximum(z, 0.0)
    return h @ out_params[0] + out_params[1]


if __name__ == "__main__":
    # Small, module-consistent shapes (note: batch > 1, matching PyTorch BN train-mode).
    batch = 8
    state_size = 16
    hidden_layers = [32, 32]
    action_size = 4

    key = jax.random.PRNGKey(0)
    key, k_x = jax.random.split(key)
    x = jax.random.normal(k_x, (batch, state_size), jnp.float32)

    hidden_params, out_params = init_params(key, state_size, hidden_layers, action_size)
    packed = pack_params(hidden_params, out_params, state_size, action_size)

    out = qnetwork_forward(x, packed)
    out = jax.block_until_ready(out)

    ref = reference_forward(x, hidden_params, out_params)
    assert out.shape == (batch, action_size)
    assert jnp.allclose(out, ref, atol=1e-4, rtol=1e-4)

    print("KERNEL_OK")
</pallas_src>

<mosaic_0001>
module attributes {stable_mosaic.version = 11 : i64} {
  func.func @kernel(%arg0: memref<8x16xf32, #tpu.memory_space<vmem>>, %arg1: memref<4x128xf32, #tpu.memory_space<vmem>>, %arg2: memref<16x128xf32, #tpu.memory_space<vmem>>, %arg3: memref<128x128xf32, #tpu.memory_space<vmem>>, %arg4: memref<128x128xf32, #tpu.memory_space<vmem>>, %arg5: memref<1x128xf32, #tpu.memory_space<vmem>>, %arg6: memref<8x128xf32, #tpu.memory_space<vmem>>) attributes {dimension_semantics = [], scalar_prefetch = 0 : i64, scratch_operands = 0 : i64, tpu.core_type = #tpu.core_type<tc>} {
    %c0 = arith.constant 0 : index
    %c0_0 = arith.constant 0 : index
    %0 = vector.load %arg1[%c0, %c0_0] : memref<4x128xf32, #tpu.memory_space<vmem>>, vector<4x128xf32>
    %c0_1 = arith.constant 0 : index
    %c0_2 = arith.constant 0 : index
    %1 = vector.load %arg0[%c0_1, %c0_2] : memref<8x16xf32, #tpu.memory_space<vmem>>, vector<8x16xf32>
    %c0_3 = arith.constant 0 : index
    %c0_4 = arith.constant 0 : index
    %2 = vector.load %arg2[%c0_3, %c0_4] : memref<16x128xf32, #tpu.memory_space<vmem>>, vector<16x128xf32>
    %cst = arith.constant dense<0.000000e+00> : vector<8x128xf32>
    %3 = tpu.matmul %1, %2, %cst {dimension_numbers = #tpu.dot_dimension_numbers<[1], [0], [0], [1], [0, 0, 1, 1], [], []>} : vector<8x16xf32>, vector<16x128xf32>, vector<8x128xf32> -> vector<8x128xf32>
    %cst_5 = arith.constant dense<0.000000e+00> : vector<128xf32>
    %4 = vector.multi_reduction <add>, %3, %cst_5 [0] : vector<8x128xf32> to vector<128xf32>
    %5 = vector.shape_cast %4 : vector<128xf32> to vector<1x128xf32>
    %cst_6 = arith.constant 8.000000e+00 : f32
    %6 = vector.broadcast %cst_6 : f32 to vector<1x128xf32>
    %7 = arith.divf %5, %6 : vector<1x128xf32>
    %8 = arith.mulf %3, %3 : vector<8x128xf32>
    %cst_7 = arith.constant dense<0.000000e+00> : vector<128xf32>
    %9 = vector.multi_reduction <add>, %8, %cst_7 [0] : vector<8x128xf32> to vector<128xf32>
    %10 = vector.shape_cast %9 : vector<128xf32> to vector<1x128xf32>
    %cst_8 = arith.constant 8.000000e+00 : f32
    %11 = vector.broadcast %cst_8 : f32 to vector<1x128xf32>
    %12 = arith.divf %10, %11 : vector<1x128xf32>
    %13 = arith.mulf %7, %7 : vector<1x128xf32>
    %14 = arith.subf %12, %13 : vector<1x128xf32>
    %cst_9 = arith.constant 0.000000e+00 : f32
    %15 = vector.broadcast %cst_9 : f32 to vector<1x128xf32>
    %16 = arith.maximumf %14, %15 : vector<1x128xf32>
    %17 = vector.extract_strided_slice %0 {offsets = [0, 0], sizes = [1, 128], strides = [1, 1]} : vector<4x128xf32> to vector<1x128xf32>
    %18 = vector.extract_strided_slice %0 {offsets = [1, 0], sizes = [1, 128], strides = [1, 1]} : vector<4x128xf32> to vector<1x128xf32>
    %cst_10 = arith.constant 9.99999974E-6 : f32
    %19 = vector.broadcast %cst_10 : f32 to vector<1x128xf32>
    %20 = arith.addf %16, %19 : vector<1x128xf32>
    %21 = math.rsqrt %20 : vector<1x128xf32>
    %22 = arith.mulf %17, %21 : vector<1x128xf32>
    %23 = arith.mulf %7, %22 : vector<1x128xf32>
    %24 = arith.subf %18, %23 : vector<1x128xf32>
    %25 = vector.broadcast %22 : vector<1x128xf32> to vector<8x128xf32>
    %26 = arith.mulf %3, %25 : vector<8x128xf32>
    %27 = vector.broadcast %24 : vector<1x128xf32> to vector<8x128xf32>
    %28 = arith.addf %26, %27 : vector<8x128xf32>
    %cst_11 = arith.constant 0.000000e+00 : f32
    %29 = vector.broadcast %cst_11 : f32 to vector<8x128xf32>
    %30 = arith.maximumf %28, %29 : vector<8x128xf32>
    %c0_12 = arith.constant 0 : index
    %c0_13 = arith.constant 0 : index
    %31 = vector.load %arg3[%c0_12, %c0_13] : memref<128x128xf32, #tpu.memory_space<vmem>>, vector<128x128xf32>
    %cst_14 = arith.constant dense<0.000000e+00> : vector<8x128xf32>
    %32 = tpu.matmul %30, %31, %cst_14 {dimension_numbers = #tpu.dot_dimension_numbers<[1], [0], [0], [1], [0, 0, 1, 1], [], []>} : vector<8x128xf32>, vector<128x128xf32>, vector<8x128xf32> -> vector<8x128xf32>
    %cst_15 = arith.constant dense<0.000000e+00> : vector<128xf32>
    %33 = vector.multi_reduction <add>, %32, %cst_15 [0] : vector<8x128xf32> to vector<128xf32>
    %34 = vector.shape_cast %33 : vector<128xf32> to vector<1x128xf32>
    %cst_16 = arith.constant 8.000000e+00 : f32
    %35 = vector.broadcast %cst_16 : f32 to vector<1x128xf32>
    %36 = arith.divf %34, %35 : vector<1x128xf32>
    %37 = arith.mulf %32, %32 : vector<8x128xf32>
    %cst_17 = arith.constant dense<0.000000e+00> : vector<128xf32>
    %38 = vector.multi_reduction <add>, %37, %cst_17 [0] : vector<8x128xf32> to vector<128xf32>
    %39 = vector.shape_cast %38 : vector<128xf32> to vector<1x128xf32>
    %cst_18 = arith.constant 8.000000e+00 : f32
    %40 = vector.broadcast %cst_18 : f32 to vector<1x128xf32>
    %41 = arith.divf %39, %40 : vector<1x128xf32>
    %42 = arith.mulf %36, %36 : vector<1x128xf32>
    %43 = arith.subf %41, %42 : vector<1x128xf32>
    %cst_19 = arith.constant 0.000000e+00 : f32
    %44 = vector.broadcast %cst_19 : f32 to vector<1x128xf32>
    %45 = arith.maximumf %43, %44 : vector<1x128xf32>
    %46 = vector.extract_strided_slice %0 {offsets = [2, 0], sizes = [1, 128], strides = [1, 1]} : vector<4x128xf32> to vector<1x128xf32>
    %47 = vector.extract_strided_slice %0 {offsets = [3, 0], sizes = [1, 128], strides = [1, 1]} : vector<4x128xf32> to vector<1x128xf32>
    %cst_20 = arith.constant 9.99999974E-6 : f32
    %48 = vector.broadcast %cst_20 : f32 to vector<1x128xf32>
    %49 = arith.addf %45, %48 : vector<1x128xf32>
    %50 = math.rsqrt %49 : vector<1x128xf32>
    %51 = arith.mulf %46, %50 : vector<1x128xf32>
    %52 = arith.mulf %36, %51 : vector<1x128xf32>
    %53 = arith.subf %47, %52 : vector<1x128xf32>
    %54 = vector.broadcast %51 : vector<1x128xf32> to vector<8x128xf32>
    %55 = arith.mulf %32, %54 : vector<8x128xf32>
    %56 = vector.broadcast %53 : vector<1x128xf32> to vector<8x128xf32>
    %57 = arith.addf %55, %56 : vector<8x128xf32>
    %cst_21 = arith.constant 0.000000e+00 : f32
    %58 = vector.broadcast %cst_21 : f32 to vector<8x128xf32>
    %59 = arith.maximumf %57, %58 : vector<8x128xf32>
    %c0_22 = arith.constant 0 : index
    %c0_23 = arith.constant 0 : index
    %60 = vector.load %arg4[%c0_22, %c0_23] : memref<128x128xf32, #tpu.memory_space<vmem>>, vector<128x128xf32>
    %cst_24 = arith.constant dense<0.000000e+00> : vector<8x128xf32>
    %61 = tpu.matmul %59, %60, %cst_24 {dimension_numbers = #tpu.dot_dimension_numbers<[1], [0], [0], [1], [0, 0, 1, 1], [], []>} : vector<8x128xf32>, vector<128x128xf32>, vector<8x128xf32> -> vector<8x128xf32>
    %c0_25 = arith.constant 0 : index
    %c0_26 = arith.constant 0 : index
    %62 = vector.load %arg5[%c0_25, %c0_26] : memref<1x128xf32, #tpu.memory_space<vmem>>, vector<1x128xf32>
    %63 = vector.broadcast %62 : vector<1x128xf32> to vector<8x128xf32>
    %64 = arith.addf %61, %63 : vector<8x128xf32>
    %c0_27 = arith.constant 0 : index
    %c0_28 = arith.constant 0 : index
    %65 = vector.load %arg6[%c0_27, %c0_28] : memref<8x128xf32, #tpu.memory_space<vmem>>, vector<8x128xf32>
    tpu.vector_store %arg6[%c0_27, %c0_28], %64 {strides = array<i32>} : memref<8x128xf32, #tpu.memory_space<vmem>>, vector<8x128xf32>,
    return
  }
}

</mosaic_0001>

<llo_original>
// kernel: tpu_custom_call.1
$region0: #{tpu_custom_call.1}
  #allocation0 [shape = 'u32[]', space=smem, size = 0x4, offset = 0x4, fixed_abs, tag = 'smem constant byte address 0x4 - core index']
  #allocation1 [shape = 'u32[72,128]{1,0:T(1,128)}', space=vmem, size = 0x9000, scoped, tag = 'internal scratch']
  %s0 = inlined_call_operand.hbm [shape: f32[8,16], index: 0, kind: input, shape index: {}]
  %s1 = inlined_call_operand.hbm [shape: f32[4,128], index: 1, kind: input, shape index: {}]
  %s2 = inlined_call_operand.hbm [shape: f32[16,128], index: 2, kind: input, shape index: {}]
  %s3 = inlined_call_operand.hbm [shape: f32[128,128], index: 3, kind: input, shape index: {}]
  %s4 = inlined_call_operand.hbm [shape: f32[128,128], index: 4, kind: input, shape index: {}]
  %s5 = inlined_call_operand.vmem [shape: f32[1,128], index: 5, kind: input, shape index: {}]
  %s6 = inlined_call_operand.hbm [shape: f32[8,128], index: 6, kind: output, shape index: {}]
  %s7 = sld [smem:[#allocation0]]
  $region54: #{tpu_custom_call.1} parent=0
    _
  %s9 = ssub.s32 1, %s7
  %s10 = scalar_select 0, %s9, %s7
  $region1: #{tpu_custom_call.1} parent=0
    #allocation2 [shape = 'u8[4096]{0}', space=vmem, size = 0x1000, scoped, tag = 'input window, operand 0, single buffered']
    #allocation3 [shape = 's32[1]{0}', space=sflag, size = 0x4, scoped, tag = 'scoped memory for tpu_custom_call.1']
    #allocation4 [shape = 's32[1]{0}', space=sflag, size = 0x4, scoped, tag = 'scoped memory for tpu_custom_call.1']
    #allocation5 [shape = 'u8[2048]{0}', space=vmem, size = 0x800, scoped, tag = 'input window, operand 1, single buffered']
    #allocation6 [shape = 's32[1]{0}', space=sflag, size = 0x4, scoped, tag = 'scoped memory for tpu_custom_call.1']
    #allocation7 [shape = 'u8[8192]{0}', space=vmem, size = 0x2000, scoped, tag = 'input window, operand 2, single buffered']
    #allocation8 [shape = 'u8[65536]{0}', space=vmem, size = 0x10000, scoped, tag = 'input window, operand 3, single buffered']
    #allocation9 [shape = 's32[1]{0}', space=sflag, size = 0x4, scoped, tag = 'scoped memory for tpu_custom_call.1']
    #allocation10 [shape = 'u8[65536]{0}', space=vmem, size = 0x10000, scoped, tag = 'input window, operand 4, single buffered']
    #allocation11 [shape = 'u8[4096]{0}', space=vmem, size = 0x1000, scoped, tag = 'output window, operand 0, single buffered']
    %11 = vsyncpa [#allocation3], 0
    %12 = vsyncpa [#allocation6], 0
    %13 = vsyncpa [#allocation9], 0
    %14 = vsyncpa [#allocation4], 0
    // Predicated region
    $region2: #{tpu_custom_call.1} parent=1 // pred_check
      _
    $region3: #{tpu_custom_call.1} parent=1 // pred_check_branch
      %16 = sbr.rel (0) target = $region5
    $region4: #{tpu_custom_call.1} parent=1 // pred_region
      %18 = vsyncadd [#allocation3], 0
      %s20 = sshll.u32 %s0, 4
      %s21 = int_to_ptr.hbm [resolvable:$true] %s20
      %s22 = sshll.u32 [#allocation2], 4
      %s23 = int_to_ptr.vmem [resolvable:$true] %s22
      %25 = dma.hbm_to_vmem [thread:$0]  %s21, 128, %s23, [#allocation3]
    $region5: #{tpu_custom_call.1} parent=1 // pred_fallthru
      _
    // Predicated region
    $region6: #{tpu_custom_call.1} parent=1 // pred_check
      _
    $region7: #{tpu_custom_call.1} parent=1 // pred_check_branch
      %27 = sbr.rel (0) target = $region9
    $region8: #{tpu_custom_call.1} parent=1 // pred_region
      %29 = vsyncadd [#allocation6], 0
      %s31 = sshll.u32 %s1, 4
      %s32 = int_to_ptr.hbm [resolvable:$true] %s31
      %s33 = sshll.u32 [#allocation5], 4
      %s34 = int_to_ptr.vmem [resolvable:$true] %s33
      %36 = dma.hbm_to_vmem [thread:$0]  %s32, 64, %s34, [#allocation6]
    $region9: #{tpu_custom_call.1} parent=1 // pred_fallthru
      _
    // Predicated region
    $region10: #{tpu_custom_call.1} parent=1 // pred_check
      _
    $region11: #{tpu_custom_call.1} parent=1 // pred_check_branch
      %38 = sbr.rel (0) target = $region13
    $region12: #{tpu_custom_call.1} parent=1 // pred_region
      %40 = vsyncadd [#allocation6], 0
      %s41 = sshll.u32 %s2, 4
      %s42 = int_to_ptr.hbm [resolvable:$true] %s41
      %s43 = sshll.u32 [#allocation7], 4
      %s44 = int_to_ptr.vmem [resolvable:$true] %s43
      %49 = dma.hbm_to_vmem [thread:$0]  %s42, 256, %s44, [#allocation6], 128, 128, 8
    $region13: #{tpu_custom_call.1} parent=1 // pred_fallthru
      _
    // Predicated region
    $region14: #{tpu_custom_call.1} parent=1 // pred_check
      _
    $region15: #{tpu_custom_call.1} parent=1 // pred_check_branch
      %51 = sbr.rel (0) target = $region17
    $region16: #{tpu_custom_call.1} parent=1 // pred_region
      %53 = vsyncadd [#allocation9], 0
      %s54 = sshll.u32 %s3, 4
      %s55 = int_to_ptr.hbm [resolvable:$true] %s54
      %s56 = sshll.u32 [#allocation8], 4
      %s57 = int_to_ptr.vmem [resolvable:$true] %s56
      %62 = dma.hbm_to_vmem [thread:$0]  %s55, 2048, %s57, [#allocation9], 128, 128, 8
    $region17: #{tpu_custom_call.1} parent=1 // pred_fallthru
      _
    // Predicated region
    $region18: #{tpu_custom_call.1} parent=1 // pred_check
      _
    $region19: #{tpu_custom_call.1} parent=1 // pred_check_branch
      %64 = sbr.rel (0) target = $region21
    $region20: #{tpu_custom_call.1} parent=1 // pred_region
      %66 = vsyncadd [#allocation9], 0
      %s67 = sshll.u32 %s4, 4
      %s68 = int_to_ptr.hbm [resolvable:$true] %s67
      %s69 = sshll.u32 [#allocation10], 4
      %s70 = int_to_ptr.vmem [resolvable:$true] %s69
      %75 = dma.hbm_to_vmem [thread:$0]  %s68, 2048, %s70, [#allocation9], 128, 128, 8
    $region21: #{tpu_custom_call.1} parent=1 // pred_fallthru
      _
    // Predicated region
    $region22: #{tpu_custom_call.1} parent=1 // pred_check
      _
    $region23: #{tpu_custom_call.1} parent=1 // pred_check_branch
      %77 = sbr.rel (0) target = $region25
    $region24: #{tpu_custom_call.1} parent=1 // pred_region
      _
    $region25: #{tpu_custom_call.1} parent=1 // pred_fallthru
      _
    // Predicated region
    $region26: #{tpu_custom_call.1} parent=1 // pred_check
      _
    $region27: #{tpu_custom_call.1} parent=1 // pred_check_branch
      %79 = sbr.rel (0) target = $region29
    $region28: #{tpu_custom_call.1} parent=1 // pred_region
      %81 = dma.done [#allocation3], 128
    $region29: #{tpu_custom_call.1} parent=1 // pred_fallthru
      _
    // Predicated region
    $region30: #{tpu_custom_call.1} parent=1 // pred_check
      _
    $region31: #{tpu_custom_call.1} parent=1 // pred_check_branch
      %83 = sbr.rel (0) target = $region33
    $region32: #{tpu_custom_call.1} parent=1 // pred_region
      %85 = dma.done [#allocation6], 64
    $region33: #{tpu_custom_call.1} parent=1 // pred_fallthru
      _
    // Predicated region
    $region34: #{tpu_custom_call.1} parent=1 // pred_check
      _
    $region35: #{tpu_custom_call.1} parent=1 // pred_check_branch
      %87 = sbr.rel (0) target = $region37
    $region36: #{tpu_custom_call.1} parent=1 // pred_region
      %89 = dma.done [#allocation6], 256
    $region37: #{tpu_custom_call.1} parent=1 // pred_fallthru
      _
    // Predicated region
    $region38: #{tpu_custom_call.1} parent=1 // pred_check
      _
    $region39: #{tpu_custom_call.1} parent=1 // pred_check_branch
      %91 = sbr.rel (0) target = $region41
    $region40: #{tpu_custom_call.1} parent=1 // pred_region
      %93 = dma.done [#allocation9], 2048
    $region41: #{tpu_custom_call.1} parent=1 // pred_fallthru
      _
    // Predicated region
    $region42: #{tpu_custom_call.1} parent=1 // pred_check
      _
    $region43: #{tpu_custom_call.1} parent=1 // pred_check_branch
      %95 = sbr.rel (0) target = $region45
    $region44: #{tpu_custom_call.1} parent=1 // pred_region
      %97 = dma.done [#allocation9], 2048
    $region45: #{tpu_custom_call.1} parent=1 // pred_fallthru
      _
    %v98 = vld [vmem:[#allocation5] sm:$0xf]
    %v99 = vld [vmem:[#allocation2] sm:$0xff]
    %v100 = vld [vmem:[#allocation7] sm:$0xff]
    %v101 = vld [vmem:[#allocation7 + $0x8] sm:$0xff]
    %vm102 = vcmask 130048
    %v104 = vsel %vm102, %v99, 0
    %106 = vmatpush.msra.mxu0 0.0
    %107 = vmatpush.msra.mxu0 0.0
    %108 = vmatpush.msra.mxu0 0.0
    %109 = vmatpush.msra.mxu0 0.0
    %110 = vmatpush.msra.mxu0 0.0
    %111 = vmatpush.msra.mxu0 0.0
    %112 = vmatpush.msra.mxu0 0.0
    %113 = vmatpush.msra.mxu0 0.0
    %114 = vmatpush.msra.mxu0 0.0
    %115 = vmatpush.msra.mxu0 0.0
    %116 = vmatpush.msra.mxu0 0.0
    %117 = vmatpush.msra.mxu0 0.0
    %118 = vmatpush.msra.mxu0 0.0
    %119 = vmatpush.msra.mxu0 0.0
    %120 = vmatpush.msra.mxu0 %v101
    %121 = vmatpush.msra.mxu0 %v100
    %122 = vmatmul.f32.gmra.mxu0 %v104
    %v123 = vpop.f32.mrf.mxu0
    %v124 = vadd.f32 0.0, %v123
    %125 = vdwg.mxu0
    %v126 = vrot.slane %v124, 4
    %v127 = vadd.f32 %v124, %v126
    %v128 = vrot.slane %v127, 2
    %v129 = vadd.f32 %v127, %v128
    %v130 = vrot.slane %v129, 1
    %v131 = vadd.f32 %v129, %v130
    %v132 = vrcp.pop 8.0
    %v133 = vmul.f32 8.0, %v132
    %v134 = vsub.f32 1.0, %v133
    %v135 = vmul.f32 %v132, %v134
    %v136 = vadd.f32 %v132, %v135
    %vm137 = vweird.f32 %v132
    %v138 = vsel %vm137, %v132, %v136
    %v139 = vmul.f32 %v131, %v138
    %v140 = vmul.f32 %v124, %v124
    %v141 = vrot.slane %v140, 4
    %v142 = vadd.f32 %v140, %v141
    %v143 = vrot.slane %v142, 2
    %v144 = vadd.f32 %v142, %v143
    %v145 = vrot.slane %v144, 1
    %v146 = vadd.f32 %v144, %v145
    %v147 = vmul.f32 %v146, %v138
    %v148 = vmul.f32 %v139, %v139
    %v149 = vsub.f32 %v147, %v148
    %v150 = vmax.f32 %v149, 0.0
    %v151 = vadd.f32 %v150, 1e-05
    %v152 = vrsqrt.pop %v151
    %v153 = vmul.f32 %v152, %v151
    %v154 = vmul.f32 %v153, %v152
    %v155 = vmul.f32 0.5, %v154
    %v156 = vsub.f32 1.5, %v155
    %v157 = vmul.f32 %v152, %v156
    %vm158 = vweird.f32 %v151
    %vm159 = vweird.f32 %v152
    %vm160 = vmor %vm158, %vm159
    %v161 = vsel %vm160, %v152, %v157
    %v162 = vmul.f32 %v98, %v161
    %v163 = vmul.f32 %v139, %v162
    %v165 = vrot.slane %v163, 7
    %v167 = vsub.f32 %v98, %v165
    %v168 = vperm.slane %v162, 0
    %v169 = vmul.f32 %v124, %v168
    %v170 = vperm.slane %v167, 1
    %v171 = vadd.f32 %v169, %v170
    %v172 = vmax.f32 %v171, 0.0
    %v173 = vld [vmem:[#allocation8] sm:$0xff]
    %v174 = vld [vmem:[#allocation8 + $0x8] sm:$0xff]
    %v175 = vld [vmem:[#allocation8 + $0x10] sm:$0xff]
    %v176 = vld [vmem:[#allocation8 + $0x18] sm:$0xff]
    %v177 = vld [vmem:[#allocation8 + $0x20] sm:$0xff]
    %v178 = vld [vmem:[#allocation8 + $0x28] sm:$0xff]
    %v179 = vld [vmem:[#allocation8 + $0x30] sm:$0xff]
    %v180 = vld [vmem:[#allocation8 + $0x38] sm:$0xff]
    %v181 = vld [vmem:[#allocation8 + $0x40] sm:$0xff]
    %v182 = vld [vmem:[#allocation8 + $0x48] sm:$0xff]
    %v183 = vld [vmem:[#allocation8 + $0x50] sm:$0xff]
    %v184 = vld [vmem:[#allocation8 + $0x58] sm:$0xff]
    %v185 = vld [vmem:[#allocation8 + $0x60] sm:$0xff]
    %v186 = vld [vmem:[#allocation8 + $0x68] sm:$0xff]
    %v187 = vld [vmem:[#allocation8 + $0x70] sm:$0xff]
    %v188 = vld [vmem:[#allocation8 + $0x78] sm:$0xff]
    %189 = vmatpush.msra.mxu0 %v188
    %190 = vmatpush.msra.mxu0 %v187
    %191 = vmatpush.msra.mxu0 %v186
    %192 = vmatpush.msra.mxu0 %v185
    %193 = vmatpush.msra.mxu0 %v184
    %194 = vmatpush.msra.mxu0 %v183
    %195 = vmatpush.msra.mxu0 %v182
    %196 = vmatpush.msra.mxu0 %v181
    %197 = vmatpush.msra.mxu0 %v180
    %198 = vmatpush.msra.mxu0 %v179
    %199 = vmatpush.msra.mxu0 %v178
    %200 = vmatpush.msra.mxu0 %v177
    %201 = vmatpush.msra.mxu0 %v176
    %202 = vmatpush.msra.mxu0 %v175
    %203 = vmatpush.msra.mxu0 %v174
    %204 = vmatpush.msra.mxu0 %v173
    %205 = vmatmul.f32.gmra.mxu0 %v172
    %v206 = vpop.f32.mrf.mxu0
    %v207 = vadd.f32 0.0, %v206
    %208 = vdwg.mxu0
    %v209 = vrot.slane %v207, 4
    %v210 = vadd.f32 %v207, %v209
    %v211 = vrot.slane %v210, 2
    %v212 = vadd.f32 %v210, %v211
    %v213 = vrot.slane %v212, 1
    %v214 = vadd.f32 %v212, %v213
    %v215 = vmul.f32 %v214, %v138
    %v216 = vmul.f32 %v207, %v207
    %v217 = vrot.slane %v216, 4
    %v218 = vadd.f32 %v216, %v217
    %v219 = vrot.slane %v218, 2
    %v220 = vadd.f32 %v218, %v219
    %v221 = vrot.slane %v220, 1
    %v222 = vadd.f32 %v220, %v221
    %v223 = vmul.f32 %v222, %v138
    %v224 = vmul.f32 %v215, %v215
    %v225 = vsub.f32 %v223, %v224
    %v226 = vmax.f32 %v225, 0.0
    %v227 = vadd.f32 %v226, 1e-05
    %v228 = vrsqrt.pop %v227
    %v229 = vmul.f32 %v228, %v227
    %v230 = vmul.f32 %v229, %v228
    %v231 = vmul.f32 0.5, %v230
    %v232 = vsub.f32 1.5, %v231
    %v233 = vmul.f32 %v228, %v232
    %vm234 = vweird.f32 %v227
    %vm235 = vweird.f32 %v228
    %vm236 = vmor %vm234, %vm235
    %v237 = vsel %vm236, %v228, %v233
    %v238 = vmul.f32 %v98, %v237
    %v239 = vmul.f32 %v215, %v238
    %v241 = vrot.slane %v239, 7
    %v243 = vsub.f32 %v98, %v241
    %v244 = vperm.slane %v238, 2
    %v245 = vmul.f32 %v207, %v244
    %v246 = vperm.slane %v243, 3
    %v247 = vadd.f32 %v245, %v246
    %v248 = vmax.f32 %v247, 0.0
    %v249 = vld [vmem:[#allocation10] sm:$0xff]
    %v250 = vld [vmem:[#allocation10 + $0x8] sm:$0xff]
    %v251 = vld [vmem:[#allocation10 + $0x10] sm:$0xff]
    %v252 = vld [vmem:[#allocation10 + $0x18] sm:$0xff]
    %v253 = vld [vmem:[#allocation10 + $0x20] sm:$0xff]
    %v254 = vld [vmem:[#allocation10 + $0x28] sm:$0xff]
    %v255 = vld [vmem:[#allocation10 + $0x30] sm:$0xff]
    %v256 = vld [vmem:[#allocation10 + $0x38] sm:$0xff]
    %v257 = vld [vmem:[#allocation10 + $0x40] sm:$0xff]
    %v258 = vld [vmem:[#allocation10 + $0x48] sm:$0xff]
    %v259 = vld [vmem:[#allocation10 + $0x50] sm:$0xff]
    %v260 = vld [vmem:[#allocation10 + $0x58] sm:$0xff]
    %v261 = vld [vmem:[#allocation10 + $0x60] sm:$0xff]
    %v262 = vld [vmem:[#allocation10 + $0x68] sm:$0xff]
    %v263 = vld [vmem:[#allocation10 + $0x70] sm:$0xff]
    %v264 = vld [vmem:[#allocation10 + $0x78] sm:$0xff]
    %v265 = vld [vmem:[%s5] sm:$0x1]
    %v267 = vperm.slane %v265, 0
    %269 = vmatpush.msra.mxu0 %v264
    %270 = vmatpush.msra.mxu0 %v263
    %271 = vmatpush.msra.mxu0 %v262
    %272 = vmatpush.msra.mxu0 %v261
    %273 = vmatpush.msra.mxu0 %v260
    %274 = vmatpush.msra.mxu0 %v259
    %275 = vmatpush.msra.mxu0 %v258
    %276 = vmatpush.msra.mxu0 %v257
    %277 = vmatpush.msra.mxu0 %v256
    %278 = vmatpush.msra.mxu0 %v255
    %279 = vmatpush.msra.mxu0 %v254
    %280 = vmatpush.msra.mxu0 %v253
    %281 = vmatpush.msra.mxu0 %v252
    %282 = vmatpush.msra.mxu0 %v251
    %283 = vmatpush.msra.mxu0 %v250
    %284 = vmatpush.msra.mxu0 %v249
    %285 = vmatmul.f32.gmra.mxu0 %v248
    %v286 = vpop.f32.mrf.mxu0
    %v287 = vadd.f32 %v267, %v286
    %288 = vdwg.mxu0
    %289 = vst [vmem:[#allocation11] sm:$0xff] %v287
    // Predicated region
    $region46: #{tpu_custom_call.1} parent=1 // pred_check
      _
    $region47: #{tpu_custom_call.1} parent=1 // pred_check_branch
      %291 = sbr.rel (0) target = $region49
    $region48: #{tpu_custom_call.1} parent=1 // pred_region
      %293 = vsyncadd [#allocation4], 0
      %s295 = sshll.u32 [#allocation11], 4
      %s296 = int_to_ptr.vmem [resolvable:$true] %s295
      %s297 = sshll.u32 %s6, 4
      %s298 = int_to_ptr.hbm [resolvable:$true] %s297
      %300 = dma.vmem_to_hbm [thread:$0]  %s296, 128, %s298, [#allocation4]
    $region49: #{tpu_custom_call.1} parent=1 // pred_fallthru
      _
    // Predicated region
    $region50: #{tpu_custom_call.1} parent=1 // pred_check
      _
    $region51: #{tpu_custom_call.1} parent=1 // pred_check_branch
      %302 = sbr.rel (0) target = $region53
    $region52: #{tpu_custom_call.1} parent=1 // pred_region
      %304 = dma.done [#allocation4], 128
    $region53: #{tpu_custom_call.1} parent=1 // pred_fallthru
      _
    %305 = vsyncpa [#allocation3], 1
    %306 = vsyncpa [#allocation6], 1
    %307 = vsyncpa [#allocation9], 1
    %308 = vsyncpa [#allocation4], 1

</llo_original>
